<compile_context>
chip_gen: v7x
topology: tpu7x:2x2x1
jax: 0.10.0
libtpu: 0.0.40
codegen_flags: <defaults>
</compile_context>

<pallas_src>
import math

import jax
import jax.numpy as jnp
from jax.experimental import pallas as pl
from jax.experimental.pallas import tpu as pltpu


def _round_up(n, m):
    return ((n + m - 1) // m) * m


# ----------------------------------------------------------------------------
# Kernel: circular Conv1d(k=3) token embedding + (positional encoding + bias)
# ----------------------------------------------------------------------------
def data_embedding_kernel(xwin_ref, w_ref, peb_ref, out_ref):
    """Fused DataEmbedding forward for one (batch, seq) tile.

    xwin_ref : (Bt, Lt, 3*C)  circular windows [x[l-1]|x[l]|x[l+1]] per channel
    w_ref    : (3*C, D)       conv weight, row (k*C + c) == torch_weight[:, c, k]
    peb_ref  : (Lt, D)        pe[l_tile] + conv bias (bias folded in wrapper)
    out_ref  : (Bt, Lt, D)
    """
    w = w_ref[...]          # (K, D)  — tiny, stays resident in vregs
    peb = peb_ref[...]      # (Lt, D)
    bt = xwin_ref.shape[0]  # static block size

    # One MXU matmul per batch row of the block (Bt is small, static unroll).
    # Each iteration stores its result immediately -> no large live accumulator.
    for b in range(bt):
        acc = jnp.dot(xwin_ref[b], w, preferred_element_type=jnp.float32)  # (Lt, D) on MXU
        out_ref[b] = (acc + peb).astype(out_ref.dtype)


# ----------------------------------------------------------------------------
# Wrapper: layout glue + pallas_call
# ----------------------------------------------------------------------------
def data_embedding(x, conv_w, conv_b, pe, *, batch_block=8, seq_block=512):
    """DataEmbedding.forward (eval mode).  x: (B, L, c_in) -> (B, L, d_model) f32."""
    B, L, C = x.shape
    K, D = conv_w.shape
    assert K == 3 * C, "conv_w must be (3*c_in, d_model)"

    # circular k=3 windows for Conv1d(padding=1, padding_mode='circular') — layout glue.
    # column (k*C + c) multiplies conv_w row (k*C + c); k=0: x[l-1], k=1: x[l], k=2: x[l+1].
    x_win = jnp.concatenate(
        [jnp.roll(x, 1, axis=1), x, jnp.roll(x, -1, axis=1)], axis=-1
    )  # (B, L, 3C)

    # fold the conv bias into the positional table: one fewer input / DMA / per-step add
    peb = pe[:L].astype(jnp.float32) + conv_b.reshape(1, D)  # (L, D)

    # tile sizes: Lt multiple of 8 sublanes, output block ~<= Bt*Lt*D*4 bytes (~2 MiB default)
    Bt = max(1, min(batch_block, B))
    Lt = _round_up(min(seq_block, L), 8)
    nB = pl.cdiv(B, Bt)
    nL = pl.cdiv(L, Lt)
    Bp, Lp = nB * Bt, nL * Lt

    if (Bp, Lp) != (B, L):  # pad to whole blocks; padded rows compute zeros, sliced off below
        x_win = jnp.pad(x_win, ((0, Bp - B), (0, Lp - L), (0, 0)))
        peb = jnp.pad(peb, ((0, Lp - L), (0, 0)))

    out = pl.pallas_call(
        data_embedding_kernel,
        out_shape=jax.ShapeDtypeStruct((Bp, Lp, D), jnp.float32),
        grid=(nB, nL),
        in_specs=[
            pl.BlockSpec((Bt, Lt, K), lambda i, j: (i, j, 0)),  # activations: (batch, seq)-tiled
            pl.BlockSpec((K, D), lambda i, j: (0, 0)),          # weights: VMEM-resident
            pl.BlockSpec((Lt, D), lambda i, j: (j, 0)),         # pe+bias: seq-tiled
        ],
        out_specs=pl.BlockSpec((Bt, Lt, D), lambda i, j: (i, j, 0)),
        compiler_params=pltpu.CompilerParams(
            dimension_semantics=("parallel", "parallel"),  # shard blocks across TensorCores
            vmem_limit_bytes=32 * 1024 * 1024,             # v7x-safe scoped budget
        ),
    )(x_win, conv_w, peb)
    return out[:B, :L]


# ----------------------------------------------------------------------------
# Parameter init (synthetic, shapes/inits follow the nn.Module)
# ----------------------------------------------------------------------------
def init_data_embedding_params(key, c_in, d_model, max_len=1000):
    kw, kb = jax.random.split(key)

    # Conv1d(c_in, d_model, 3): kaiming_normal_(fan_in, leaky_relu) -> std ~ sqrt(2 / (3*c_in))
    fan_in = 3 * c_in
    w_torch = jax.random.normal(kw, (d_model, c_in, 3), jnp.float32) * math.sqrt(2.0 / fan_in)
    # repack torch layout (D, C, 3) -> (3*C, D), row (k*C + c) = w_torch[:, c, k]
    conv_w = jnp.transpose(w_torch, (2, 1, 0)).reshape(3 * c_in, d_model)
    lim = 1.0 / math.sqrt(fan_in)
    conv_b = jax.random.uniform(kb, (d_model,), jnp.float32, -lim, lim)

    # PositionalEncoding buffer
    position = jnp.arange(max_len, dtype=jnp.float32)[:, None]
    div_term = jnp.exp(
        jnp.arange(0, d_model, 2, dtype=jnp.float32) * (-math.log(10000.0) / d_model)
    )
    pe = jnp.zeros((max_len, d_model), jnp.float32)
    pe = pe.at[:, 0::2].set(jnp.sin(position * div_term))
    pe = pe.at[:, 1::2].set(jnp.cos(position * div_term))

    return conv_w, conv_b, pe


# ----------------------------------------------------------------------------
if __name__ == "__main__":
    # small, module-consistent shapes: x is (batch, seq, c_in); d_model lane-aligned (128)
    B, L, C_IN, D_MODEL = 2, 16, 4, 128

    key = jax.random.PRNGKey(0)
    kx, kp = jax.random.split(key)
    x = jax.random.normal(kx, (B, L, C_IN), jnp.float32)
    conv_w, conv_b, pe = init_data_embedding_params(kp, C_IN, D_MODEL)

    out = jax.block_until_ready(data_embedding(x, conv_w, conv_b, pe))

    # pure-JAX reference (circular conv + positional encoding, dropout = identity)
    x_win_ref = jnp.concatenate(
        [jnp.roll(x, 1, axis=1), x, jnp.roll(x, -1, axis=1)], axis=-1)
    ref = (jnp.einsum("blk,kd->bld", x_win_ref, conv_w,
                      precision=jax.lax.Precision.HIGHEST)
           + conv_b[None, None, :] + pe[:L][None, :, :])

    assert out.shape == (B, L, D_MODEL)
    assert bool(jnp.all(jnp.isfinite(out)))
    # tolerance accounts for TPU MXU f32 matmul precision vs HIGHEST-precision reference
    assert bool(jnp.allclose(out, ref, rtol=2e-2, atol=2e-2)), \
        float(jnp.max(jnp.abs(out - ref)))
    print("KERNEL_OK")
</pallas_src>

<mosaic_0001>
module attributes {stable_mosaic.version = 11 : i64} {
  func.func @data_embedding_kernel(%arg0: i32, %arg1: i32, %arg2: memref<2x16x12xf32, #tpu.memory_space<vmem>>, %arg3: memref<12x128xf32, #tpu.memory_space<vmem>>, %arg4: memref<16x128xf32, #tpu.memory_space<vmem>>, %arg5: memref<2x16x128xf32, #tpu.memory_space<vmem>>) attributes {dimension_semantics = [#tpu.dimension_semantics<parallel>, #tpu.dimension_semantics<parallel>], iteration_bounds = array<i64: 1, 1>, scalar_prefetch = 0 : i64, scratch_operands = 0 : i64, tpu.core_type = #tpu.core_type<tc>, window_params = [{transform_indices = @transform_0, window_bounds = array<i64: 2, 16, 12>}, {pipeline_mode = #tpu.pipeline_mode<synchronous>, transform_indices = @transform_1, window_bounds = array<i64: 12, 128>}, {transform_indices = @transform_2, window_bounds = array<i64: 16, 128>}, {transform_indices = @transform_3, window_bounds = array<i64: 2, 16, 128>}]} {
    %c0 = arith.constant 0 : index
    %c0_0 = arith.constant 0 : index
    %0 = vector.load %arg3[%c0, %c0_0] : memref<12x128xf32, #tpu.memory_space<vmem>>, vector<12x128xf32>
    %c0_1 = arith.constant 0 : index
    %c0_2 = arith.constant 0 : index
    %1 = vector.load %arg4[%c0_1, %c0_2] : memref<16x128xf32, #tpu.memory_space<vmem>>, vector<16x128xf32>
    %c0_3 = arith.constant 0 : index
    %c0_4 = arith.constant 0 : index
    %c0_5 = arith.constant 0 : index
    %2 = vector.load %arg2[%c0_3, %c0_4, %c0_5] : memref<2x16x12xf32, #tpu.memory_space<vmem>>, vector<1x16x12xf32>
    %3 = vector.shape_cast %2 : vector<1x16x12xf32> to vector<16x12xf32>
    %cst = arith.constant dense<0.000000e+00> : vector<16x128xf32>
    %4 = tpu.matmul %3, %0, %cst {dimension_numbers = #tpu.dot_dimension_numbers<[1], [0], [0], [1], [0, 0, 1, 1], [], []>} : vector<16x12xf32>, vector<12x128xf32>, vector<16x128xf32> -> vector<16x128xf32>
    %5 = arith.addf %4, %1 : vector<16x128xf32>
    %c0_6 = arith.constant 0 : index
    %c0_7 = arith.constant 0 : index
    %c0_8 = arith.constant 0 : index
    %6 = vector.load %arg5[%c0_6, %c0_7, %c0_8] : memref<2x16x128xf32, #tpu.memory_space<vmem>>, vector<1x16x128xf32>
    %7 = vector.shape_cast %6 : vector<1x16x128xf32> to vector<16x128xf32>
    %8 = vector.shape_cast %5 : vector<16x128xf32> to vector<1x16x128xf32>
    tpu.vector_store %arg5[%c0_6, %c0_7, %c0_8], %8 {strides = array<i32>} : memref<2x16x128xf32, #tpu.memory_space<vmem>>, vector<1x16x128xf32>,
    %c1 = arith.constant 1 : index
    %c0_9 = arith.constant 0 : index
    %c0_10 = arith.constant 0 : index
    %9 = vector.load %arg2[%c1, %c0_9, %c0_10] : memref<2x16x12xf32, #tpu.memory_space<vmem>>, vector<1x16x12xf32>
    %10 = vector.shape_cast %9 : vector<1x16x12xf32> to vector<16x12xf32>
    %cst_11 = arith.constant dense<0.000000e+00> : vector<16x128xf32>
    %11 = tpu.matmul %10, %0, %cst_11 {dimension_numbers = #tpu.dot_dimension_numbers<[1], [0], [0], [1], [0, 0, 1, 1], [], []>} : vector<16x12xf32>, vector<12x128xf32>, vector<16x128xf32> -> vector<16x128xf32>
    %12 = arith.addf %11, %1 : vector<16x128xf32>
    %c1_12 = arith.constant 1 : index
    %c0_13 = arith.constant 0 : index
    %c0_14 = arith.constant 0 : index
    %13 = vector.load %arg5[%c1_12, %c0_13, %c0_14] : memref<2x16x128xf32, #tpu.memory_space<vmem>>, vector<1x16x128xf32>
    %14 = vector.shape_cast %13 : vector<1x16x128xf32> to vector<16x128xf32>
    %15 = vector.shape_cast %12 : vector<16x128xf32> to vector<1x16x128xf32>
    tpu.vector_store %arg5[%c1_12, %c0_13, %c0_14], %15 {strides = array<i32>} : memref<2x16x128xf32, #tpu.memory_space<vmem>>, vector<1x16x128xf32>,
    return
  }
  func.func @transform_0(%arg0: i32, %arg1: i32) -> (i32, i32, i32) {
    %c0_i32 = arith.constant 0 : i32
    %c0_i32_0 = arith.constant 0 : i32
    return %arg0, %arg1, %c0_i32 : i32, i32, i32
  }
  func.func @transform_1(%arg0: i32, %arg1: i32) -> (i32, i32) {
    %c0_i32 = arith.constant 0 : i32
    %c0_i32_0 = arith.constant 0 : i32
    %c0_i32_1 = arith.constant 0 : i32
    return %c0_i32, %c0_i32_0 : i32, i32
  }
  func.func @transform_2(%arg0: i32, %arg1: i32) -> (i32, i32) {
    %c0_i32 = arith.constant 0 : i32
    %c0_i32_0 = arith.constant 0 : i32
    return %arg1, %c0_i32 : i32, i32
  }
  func.func @transform_3(%arg0: i32, %arg1: i32) -> (i32, i32, i32) {
    %c0_i32 = arith.constant 0 : i32
    %c0_i32_0 = arith.constant 0 : i32
    return %arg0, %arg1, %c0_i32 : i32, i32, i32
  }
}

</mosaic_0001>

<llo_original>
// kernel: tpu_custom_call.1
$region0: #{tpu_custom_call.1}
  #allocation0 [shape = 'u32[]', space=smem, size = 0x4, offset = 0x4, fixed_abs, tag = 'smem constant byte address 0x4 - core index']
  #allocation1 [shape = 'u32[144,128]{1,0:T(1,128)}', space=vmem, size = 0x12000, scoped, tag = 'internal scratch']
  %s0 = inlined_call_operand.vmem [shape: f32[2,16,12], index: 0, kind: input, shape index: {}]
  %s1 = inlined_call_operand.vmem [shape: f32[12,128], index: 1, kind: input, shape index: {}]
  %s2 = inlined_call_operand.vmem [shape: f32[16,128], index: 2, kind: input, shape index: {}]
  %s3 = inlined_call_operand.hbm [shape: f32[2,16,128], index: 3, kind: output, shape index: {}]
  %s4 = sld [smem:[#allocation0]]
  $region22: #{tpu_custom_call.1} parent=0
    _
  %s6 = ssub.s32 1, %s4
  %s7 = scalar_select 0, %s6, %s4
  $region1: #{tpu_custom_call.1} parent=0
    #allocation2 [shape = 'u8[16384]{0}', space=vmem, size = 0x4000, scoped, tag = 'output window, operand 0, single buffered']
    #allocation3 [shape = 's32[1]{0}', space=sflag, size = 0x4, scoped, tag = 'scoped memory for tpu_custom_call.1']
    %8 = vsyncpa [#allocation3], 0
    // Predicated region
    $region2: #{tpu_custom_call.1} parent=1 // pred_check
      _
    $region3: #{tpu_custom_call.1} parent=1 // pred_check_branch
      %10 = sbr.rel (0) target = $region5
    $region4: #{tpu_custom_call.1} parent=1 // pred_region
      _
    $region5: #{tpu_custom_call.1} parent=1 // pred_fallthru
      _
    // Predicated region
    $region6: #{tpu_custom_call.1} parent=1 // pred_check
      _
    $region7: #{tpu_custom_call.1} parent=1 // pred_check_branch
      %12 = sbr.rel (0) target = $region9
    $region8: #{tpu_custom_call.1} parent=1 // pred_region
      _
    $region9: #{tpu_custom_call.1} parent=1 // pred_fallthru
      _
    // Predicated region
    $region10: #{tpu_custom_call.1} parent=1 // pred_check
      _
    $region11: #{tpu_custom_call.1} parent=1 // pred_check_branch
      %14 = sbr.rel (0) target = $region13
    $region12: #{tpu_custom_call.1} parent=1 // pred_region
      _
    $region13: #{tpu_custom_call.1} parent=1 // pred_fallthru
      _
    %v15 = vld [vmem:[%s1] sm:$0xff]
    %v16 = vld [vmem:[%s1 + $0x8] sm:$0xf]
    %v17 = vld [vmem:[%s2] sm:$0xff]
    %v18 = vld [vmem:[%s2 + $0x8] sm:$0xff]
    %v19 = vld [vmem:[%s0] sm:$0xff]
    %v20 = vld [vmem:[%s0 + $0x8] sm:$0xff]
    %vm21 = vcmask 97280
    %v23 = vsel %vm21, %v19, 0
    %v26 = vsel %vm21, %v20, 0
    %vm28 = vcmask 1043456
    %v30 = vsel %vm28, %v16, 0
    %32 = vmatprep.subr.mxu0 0.0
    %33 = vmatpush1.msra.mxu0 %v15
    %34 = vmatprep.subr.mxu0 0.0
    %35 = vmatpush1.msra.mxu0 %v30
    %36 = vmatprep.subr.mxu0 0.0
    %37 = vmatpush1.msra.mxu0 0.0
    %38 = vmatprep.subr.mxu0 0.0
    %39 = vmatpush1.msra.mxu0 0.0
    %40 = vmatprep.subr.mxu0 0.0
    %41 = vmatpush1.msra.mxu0 0.0
    %42 = vmatprep.subr.mxu0 0.0
    %43 = vmatpush1.msra.mxu0 0.0
    %44 = vmatprep.subr.mxu0 0.0
    %45 = vmatpush1.msra.mxu0 0.0
    %46 = vmatprep.subr.mxu0 0.0
    %47 = vmatpush1.msra.mxu0 0.0
    %48 = vmatprep.subr.mxu0 0.0
    %49 = vmatpush1.msra.mxu0 0.0
    %50 = vmatprep.subr.mxu0 0.0
    %51 = vmatpush1.msra.mxu0 0.0
    %52 = vmatprep.subr.mxu0 0.0
    %53 = vmatpush1.msra.mxu0 0.0
    %54 = vmatprep.subr.mxu0 0.0
    %55 = vmatpush1.msra.mxu0 0.0
    %56 = vmatprep.subr.mxu0 0.0
    %57 = vmatpush1.msra.mxu0 0.0
    %58 = vmatprep.subr.mxu0 0.0
    %59 = vmatpush1.msra.mxu0 0.0
    %60 = vmatprep.subr.mxu0 0.0
    %61 = vmatpush1.msra.mxu0 0.0
    %62 = vmatprep.subr.mxu0 0.0
    %63 = vmatpush1.msra.mxu0 0.0
    %64 = vmatprep.subr.mxu0 0.0
    %65 = vmatpush1.msra.mxu0 0.0
    %66 = vmatprep.subr.mxu0 0.0
    %67 = vmatpush1.msra.mxu0 0.0
    %68 = vmatprep.subr.mxu0 0.0
    %69 = vmatpush1.msra.mxu0 0.0
    %70 = vmatprep.subr.mxu0 0.0
    %71 = vmatpush1.msra.mxu0 0.0
    %72 = vmatprep.subr.mxu0 0.0
    %73 = vmatpush1.msra.mxu0 0.0
    %74 = vmatprep.subr.mxu0 0.0
    %75 = vmatpush1.msra.mxu0 0.0
    %76 = vmatprep.subr.mxu0 0.0
    %77 = vmatpush1.msra.mxu0 0.0
    %78 = vmatprep.subr.mxu0 0.0
    %79 = vmatpush1.msra.mxu0 0.0
    %80 = vmatprep.subr.mxu0 0.0
    %81 = vmatpush1.msra.mxu0 0.0
    %82 = vmatprep.subr.mxu0 0.0
    %83 = vmatpush1.msra.mxu0 0.0
    %84 = vmatprep.subr.mxu0 0.0
    %85 = vmatpush1.msra.mxu0 0.0
    %86 = vmatprep.subr.mxu0 0.0
    %87 = vmatpush1.msra.mxu0 0.0
    %88 = vmatprep.subr.mxu0 0.0
    %89 = vmatpush1.msra.mxu0 0.0
    %90 = vmatprep.subr.mxu0 0.0
    %91 = vmatpush1.msra.mxu0 0.0
    %92 = vmatprep.subr.mxu0 0.0
    %93 = vmatpush1.msra.mxu0 0.0
    %94 = vmatprep.subr.mxu0 0.0
    %95 = vmatpush1.msra.mxu0 0.0
    %96 = vmatprep.mubr.f32.mxu0 0.0
    %97 = vmatmul.mubr.f32.gmra.mrb[0].mxu0 %v23
    %v98 = vpop.f32.mrb[0].mxu0
    %v99 = vadd.f32 %v17, %v98
    %v100 = vpop.f32.mrb[0].mxu0
    %101 = vmatprep.mubr.f32.mxu0 0.0
    %102 = vmatmul.mubr.f32.gmra.mrb[0].mxu0 %v26
    %v103 = vpop.f32.mrb[0].mxu0
    %v104 = vadd.f32 %v18, %v103
    %v105 = vpop.f32.mrb[0].mxu0
    %106 = vdwg.mxu0
    %107 = vst [vmem:[#allocation2] sm:$0xff] %v99
    %108 = vst [vmem:[#allocation2 + $0x8] sm:$0xff] %v104
    %s109 = scalar_lea.vmem %s0, 16
    %v110 = vld [vmem:[%s109] sm:$0xff]
    %v111 = vld [vmem:[%s109 + $0x8] sm:$0xff]
    %v113 = vsel %vm21, %v110, 0
    %v116 = vsel %vm21, %v111, 0
    %118 = vmatprep.subr.mxu0 0.0
    %119 = vmatpush1.msra.mxu0 %v15
    %120 = vmatprep.subr.mxu0 0.0
    %121 = vmatpush1.msra.mxu0 %v30
    %122 = vmatprep.subr.mxu0 0.0
    %123 = vmatpush1.msra.mxu0 0.0
    %124 = vmatprep.subr.mxu0 0.0
    %125 = vmatpush1.msra.mxu0 0.0
    %126 = vmatprep.subr.mxu0 0.0
    %127 = vmatpush1.msra.mxu0 0.0
    %128 = vmatprep.subr.mxu0 0.0
    %129 = vmatpush1.msra.mxu0 0.0
    %130 = vmatprep.subr.mxu0 0.0
    %131 = vmatpush1.msra.mxu0 0.0
    %132 = vmatprep.subr.mxu0 0.0
    %133 = vmatpush1.msra.mxu0 0.0
    %134 = vmatprep.subr.mxu0 0.0
    %135 = vmatpush1.msra.mxu0 0.0
    %136 = vmatprep.subr.mxu0 0.0
    %137 = vmatpush1.msra.mxu0 0.0
    %138 = vmatprep.subr.mxu0 0.0
    %139 = vmatpush1.msra.mxu0 0.0
    %140 = vmatprep.subr.mxu0 0.0
    %141 = vmatpush1.msra.mxu0 0.0
    %142 = vmatprep.subr.mxu0 0.0
    %143 = vmatpush1.msra.mxu0 0.0
    %144 = vmatprep.subr.mxu0 0.0
    %145 = vmatpush1.msra.mxu0 0.0
    %146 = vmatprep.subr.mxu0 0.0
    %147 = vmatpush1.msra.mxu0 0.0
    %148 = vmatprep.subr.mxu0 0.0
    %149 = vmatpush1.msra.mxu0 0.0
    %150 = vmatprep.subr.mxu0 0.0
    %151 = vmatpush1.msra.mxu0 0.0
    %152 = vmatprep.subr.mxu0 0.0
    %153 = vmatpush1.msra.mxu0 0.0
    %154 = vmatprep.subr.mxu0 0.0
    %155 = vmatpush1.msra.mxu0 0.0
    %156 = vmatprep.subr.mxu0 0.0
    %157 = vmatpush1.msra.mxu0 0.0
    %158 = vmatprep.subr.mxu0 0.0
    %159 = vmatpush1.msra.mxu0 0.0
    %160 = vmatprep.subr.mxu0 0.0
    %161 = vmatpush1.msra.mxu0 0.0
    %162 = vmatprep.subr.mxu0 0.0
    %163 = vmatpush1.msra.mxu0 0.0
    %164 = vmatprep.subr.mxu0 0.0
    %165 = vmatpush1.msra.mxu0 0.0
    %166 = vmatprep.subr.mxu0 0.0
    %167 = vmatpush1.msra.mxu0 0.0
    %168 = vmatprep.subr.mxu0 0.0
    %169 = vmatpush1.msra.mxu0 0.0
    %170 = vmatprep.subr.mxu0 0.0
    %171 = vmatpush1.msra.mxu0 0.0
    %172 = vmatprep.subr.mxu0 0.0
    %173 = vmatpush1.msra.mxu0 0.0
    %174 = vmatprep.subr.mxu0 0.0
    %175 = vmatpush1.msra.mxu0 0.0
    %176 = vmatprep.subr.mxu0 0.0
    %177 = vmatpush1.msra.mxu0 0.0
    %178 = vmatprep.subr.mxu0 0.0
    %179 = vmatpush1.msra.mxu0 0.0
    %180 = vmatprep.subr.mxu0 0.0
    %181 = vmatpush1.msra.mxu0 0.0
    %182 = vmatprep.mubr.f32.mxu0 0.0
    %183 = vmatmul.mubr.f32.gmra.mrb[0].mxu0 %v113
    %v184 = vpop.f32.mrb[0].mxu0
    %v185 = vadd.f32 %v17, %v184
    %v186 = vpop.f32.mrb[0].mxu0
    %187 = vmatprep.mubr.f32.mxu0 0.0
    %188 = vmatmul.mubr.f32.gmra.mrb[0].mxu0 %v116
    %v189 = vpop.f32.mrb[0].mxu0
    %v190 = vadd.f32 %v18, %v189
    %v191 = vpop.f32.mrb[0].mxu0
    %192 = vdwg.mxu0
    %s193 = scalar_lea.vmem [#allocation2], 16
    %194 = vst [vmem:[%s193] sm:$0xff] %v185
    %195 = vst [vmem:[%s193 + $0x8] sm:$0xff] %v190
    // Predicated region
    $region14: #{tpu_custom_call.1} parent=1 // pred_check
      _
    $region15: #{tpu_custom_call.1} parent=1 // pred_check_branch
      %197 = sbr.rel (0) target = $region17
    $region16: #{tpu_custom_call.1} parent=1 // pred_region
      %s199 = ssub.s32 512, 512
      %200 = vsyncadd [#allocation3], %s199
      %s201 = sshll.u32 [#allocation2], 4
      %s202 = int_to_ptr.vmem [resolvable:$true] %s201
      %207 = dma.vmem_to_hbm [thread:$0]  %s202, 512, %s3, [#allocation3], 128, 128, 8
    $region17: #{tpu_custom_call.1} parent=1 // pred_fallthru
      _
    // Predicated region
    $region18: #{tpu_custom_call.1} parent=1 // pred_check
      _
    $region19: #{tpu_custom_call.1} parent=1 // pred_check_branch
      %209 = sbr.rel (0) target = $region21
    $region20: #{tpu_custom_call.1} parent=1 // pred_region
      %210 = dma.done [#allocation3], 512
    $region21: #{tpu_custom_call.1} parent=1 // pred_fallthru
      _
    %211 = vsyncpa [#allocation3], 1

</llo_original>
